<compile_context>
chip_gen: v6e
topology: v6e:2x2x1
jax: 0.10.0
libtpu: 0.0.40
codegen_flags: <defaults>
</compile_context>

<pallas_src>
import functools

import jax
import jax.numpy as jnp
from jax.experimental import pallas as pl
from jax.experimental.pallas import tpu as pltpu

L1, L2, L3 = 128, 256, 64   # layer1_nodes, layer2_nodes, layer3_nodes
L3P = 128                   # layer-3 width padded to a full 128-lane vreg row


def _round_up(x, m):
    return (x + m - 1) // m * m


def _fc_regression_kernel(x_ref,
                          w1_ref, b1_ref,
                          w2_ref, b2_ref,
                          w3_ref, b3_ref,
                          w4_ref, b4_ref,
                          o_ref):
    """One batch tile of the fused MLP: 3x (Linear + Sigmoid) + final Linear."""
    x = x_ref[...].astype(jnp.bfloat16)      # in-kernel cast (VPU slack)

    def sigmoid(h):
        # EUP-friendly exact sigmoid: 1/(1+exp(-h)) == 0.5*tanh(0.5*h)+0.5.
        return 0.5 * jnp.tanh(0.5 * h) + 0.5

    h = jnp.dot(x, w1_ref[...], preferred_element_type=jnp.float32) + b1_ref[...]
    h = sigmoid(h).astype(jnp.bfloat16)

    h = jnp.dot(h, w2_ref[...], preferred_element_type=jnp.float32) + b2_ref[...]
    h = sigmoid(h).astype(jnp.bfloat16)

    h = jnp.dot(h, w3_ref[...], preferred_element_type=jnp.float32) + b3_ref[...]
    h = sigmoid(h).astype(jnp.bfloat16)      # (tb, L3P); padded lanes are 0.5
                                             # but hit zero w4 columns (exact)

    # Final 1-wide layer: contract h (tb, L3P) against the zero-padded w4 row
    # matrix (8, L3P) along L3P -> (8, tb); row 0 is the real output, already
    # lane-dense.  Avoids a 128-lane-padded f32 writeback entirely.
    out = jax.lax.dot_general(
        w4_ref[...], h,
        dimension_numbers=(((1,), (1,)), ((), ())),
        preferred_element_type=jnp.float32)   # (8, tb)
    row = out[0:1, :] + b4_ref[...]           # (1, tb) f32
    o_ref[...] = row.reshape(o_ref.shape).astype(o_ref.dtype)


def prepare_params(params):
    """Zero-pad layer 3 (64->128), pack w4 as a (8, 128) row matrix, cast bf16.

    Padding is exact: padded h3 lanes see sigmoid(0)=0.5 but multiply zero w4
    entries; rows 1..7 of the w4 row-matrix are zero and are discarded.
    """
    (w1, b1), (w2, b2), (w3, b3), (w4, b4) = params
    w3p = jnp.zeros((L2, L3P), w3.dtype).at[:, :L3].set(w3)
    b3p = jnp.zeros((1, L3P), b3.dtype).at[:, :L3].set(b3)
    w4p = jnp.zeros((8, L3P), w4.dtype).at[0, :L3].set(w4[:, 0])
    b4p = b4.reshape(1, 1)

    weights = tuple(w.astype(jnp.bfloat16) for w in (w1, w2, w3p, w4p))
    biases = tuple(b.astype(jnp.float32) for b in (b1, b2, b3p, b4p))
    return weights, biases


@functools.partial(jax.jit, static_argnames=("tb",))
def fc_regression_forward(x, prepared, *, tb=1024):
    """x: (batch, input_dim) f32 -> (batch, 1) f32."""
    (w1, w2, w3, w4), (b1, b2, b3, b4) = prepared
    batch, input_dim = x.shape

    # ---- batch-tile selection ----------------------------------------------
    tb = _round_up(max(int(tb), 8), 8)
    # Keep the f32 x double-buffer within a budget safe for v7x (64 MiB VMEM).
    x_budget = 16 << 20
    tb_vmem_cap = max(8, (x_budget // (2 * input_dim * 4)) // 8 * 8)
    tb = min(tb, tb_vmem_cap)
    # Keep grid >= 2 when the batch allows it (v7x has 2 TensorCores; the
    # batch axis is "parallel").  No-op on v5e/v6e.
    tb = min(tb, max(8, _round_up(pl.cdiv(batch, 2), 8)))

    num_tiles = pl.cdiv(batch, tb)   # ragged last block; tail rows sliced off

    # ---- right-sized VMEM request ------------------------------------------
    weight_bytes = (input_dim * L1 + L1 * L2 + L2 * L3P + 8 * L3P) * 2 \
                   + (L1 + L2 + L3P + 1) * 4
    stream_bytes = 2 * tb * input_dim * 4 + 2 * tb * 4      # x + out dbl-buf
    act_bytes = tb * (L1 + L2 + L3P) * 6                    # f32 + bf16 copies
    vmem_limit = int(min(max(stream_bytes + weight_bytes + act_bytes + (4 << 20),
                             16 << 20), 32 << 20))

    # Weights / biases: constant index_map -> resident in VMEM, DMA'd once.
    def resident(a):
        return pl.BlockSpec(a.shape, lambda i: (0,) * a.ndim)

    out = pl.pallas_call(
        _fc_regression_kernel,
        out_shape=jax.ShapeDtypeStruct((num_tiles, 1, tb), jnp.float32),
        grid=(num_tiles,),
        in_specs=[
            pl.BlockSpec((tb, input_dim), lambda i: (i, 0)),  # streamed f32 x
            resident(w1), resident(b1),
            resident(w2), resident(b2),
            resident(w3), resident(b3),
            resident(w4), resident(b4),
        ],
        out_specs=pl.BlockSpec((1, 1, tb), lambda i: (i, 0, 0)),
        compiler_params=pltpu.CompilerParams(
            dimension_semantics=("parallel",),   # megacore sharding on v7x
            vmem_limit_bytes=vmem_limit,
        ),
    )(x, w1, b1, w2, b2, w3, b3, w4, b4)

    # (num_tiles, 1, tb) is batch-row-major; drop the ragged tail rows.
    return out.reshape(num_tiles * tb, 1)[:batch]


def init_params(key, input_dim):
    """PyTorch nn.Linear default init: uniform(+/- 1/sqrt(fan_in))."""
    dims = [(input_dim, L1), (L1, L2), (L2, L3), (L3, 1)]
    params = []
    for fan_in, fan_out in dims:
        key, kw, kb = jax.random.split(key, 3)
        bound = 1.0 / jnp.sqrt(fan_in)
        w = jax.random.uniform(kw, (fan_in, fan_out), jnp.float32, -bound, bound)
        b = jax.random.uniform(kb, (1, fan_out), jnp.float32, -bound, bound)
        params.append((w, b))
    return params


def reference_forward(x, params):
    """Exact f32 reference matching the PyTorch module."""
    h = x
    for i, (w, b) in enumerate(params):
        h = h @ w + b
        if i < 3:
            h = jax.nn.sigmoid(h)
    return h


def reference_forward_bf16(x, params):
    """Reference matching the kernel's bf16-operand / f32-accumulate numerics
    (same tanh formulation of sigmoid; mathematically identical)."""
    h = x.astype(jnp.bfloat16)
    for i, (w, b) in enumerate(params):
        h = jnp.dot(h, w.astype(jnp.bfloat16),
                    preferred_element_type=jnp.float32) + b
        if i < 3:
            h = (0.5 * jnp.tanh(0.5 * h) + 0.5).astype(jnp.bfloat16)
    return h


if __name__ == "__main__":
    key = jax.random.PRNGKey(0)
    batch, input_dim = 40, 32   # batch % tb != 0 exercises the ragged tail
    tb = 16                     # small tile so the test runs 3 grid steps

    kx, kp = jax.random.split(key)
    x = jax.random.normal(kx, (batch, input_dim), jnp.float32)
    params = init_params(kp, input_dim)
    prepared = prepare_params(params)

    out = fc_regression_forward(x, prepared, tb=tb)
    out = jax.block_until_ready(out)
    assert out.shape == (batch, 1), out.shape

    # Tight check against a reference with identical bf16 quantization.
    ref_bf16 = reference_forward_bf16(x, params)
    assert jnp.allclose(out, ref_bf16, atol=1e-3, rtol=1e-3), (out, ref_bf16)

    # Loose check against the exact f32 PyTorch-equivalent forward.
    ref_f32 = reference_forward(x, params)
    assert jnp.allclose(out, ref_f32, atol=5e-2, rtol=5e-2), (out, ref_f32)

    # Also exercise the default (large-tile) path once.
    out_default = jax.block_until_ready(fc_regression_forward(x, prepared))
    assert jnp.allclose(out_default, out, atol=1e-3, rtol=1e-3)

    print("KERNEL_OK")
</pallas_src>

<mosaic_0001>
module attributes {stable_mosaic.version = 11 : i64} {
  func.func @_fc_regression_kernel(%arg0: i32, %arg1: memref<16x32xf32, #tpu.memory_space<vmem>>, %arg2: memref<32x128xbf16, #tpu.memory_space<vmem>>, %arg3: memref<1x128xf32, #tpu.memory_space<vmem>>, %arg4: memref<128x256xbf16, #tpu.memory_space<vmem>>, %arg5: memref<1x256xf32, #tpu.memory_space<vmem>>, %arg6: memref<256x128xbf16, #tpu.memory_space<vmem>>, %arg7: memref<1x128xf32, #tpu.memory_space<vmem>>, %arg8: memref<8x128xbf16, #tpu.memory_space<vmem>>, %arg9: memref<1x1xf32, #tpu.memory_space<vmem>>, %arg10: memref<1x1x16xf32, #tpu.memory_space<vmem>>) attributes {dimension_semantics = [#tpu.dimension_semantics<parallel>], iteration_bounds = array<i64: 3>, scalar_prefetch = 0 : i64, scratch_operands = 0 : i64, tpu.core_type = #tpu.core_type<tc>, window_params = [{transform_indices = @transform_0, window_bounds = array<i64: 16, 32>}, {pipeline_mode = #tpu.pipeline_mode<synchronous>, transform_indices = @transform_1, window_bounds = array<i64: 32, 128>}, {pipeline_mode = #tpu.pipeline_mode<synchronous>, transform_indices = @transform_2, window_bounds = array<i64: 1, 128>}, {pipeline_mode = #tpu.pipeline_mode<synchronous>, transform_indices = @transform_3, window_bounds = array<i64: 128, 256>}, {pipeline_mode = #tpu.pipeline_mode<synchronous>, transform_indices = @transform_4, window_bounds = array<i64: 1, 256>}, {pipeline_mode = #tpu.pipeline_mode<synchronous>, transform_indices = @transform_5, window_bounds = array<i64: 256, 128>}, {pipeline_mode = #tpu.pipeline_mode<synchronous>, transform_indices = @transform_6, window_bounds = array<i64: 1, 128>}, {pipeline_mode = #tpu.pipeline_mode<synchronous>, transform_indices = @transform_7, window_bounds = array<i64: 8, 128>}, {pipeline_mode = #tpu.pipeline_mode<synchronous>, transform_indices = @transform_8, window_bounds = array<i64: 1, 1>}, {transform_indices = @transform_9, window_bounds = array<i64: 1, 1, 16>}]} {
    %c0 = arith.constant 0 : index
    %c0_0 = arith.constant 0 : index
    %0 = vector.load %arg1[%c0, %c0_0] : memref<16x32xf32, #tpu.memory_space<vmem>>, vector<16x32xf32>
    %1 = arith.truncf %0 : vector<16x32xf32> to vector<16x32xbf16>
    %c0_1 = arith.constant 0 : index
    %c0_2 = arith.constant 0 : index
    %2 = vector.load %arg2[%c0_1, %c0_2] : memref<32x128xbf16, #tpu.memory_space<vmem>>, vector<32x128xbf16>
    %cst = arith.constant dense<0.000000e+00> : vector<16x128xf32>
    %3 = tpu.matmul %1, %2, %cst {dimension_numbers = #tpu.dot_dimension_numbers<[1], [0], [0], [1], [0, 0, 1, 1], [], []>} : vector<16x32xbf16>, vector<32x128xbf16>, vector<16x128xf32> -> vector<16x128xf32>
    %c0_3 = arith.constant 0 : index
    %c0_4 = arith.constant 0 : index
    %4 = vector.load %arg3[%c0_3, %c0_4] : memref<1x128xf32, #tpu.memory_space<vmem>>, vector<1x128xf32>
    %5 = vector.broadcast %4 : vector<1x128xf32> to vector<16x128xf32>
    %6 = arith.addf %3, %5 : vector<16x128xf32>
    %cst_5 = arith.constant 5.000000e-01 : f32
    %7 = vector.broadcast %cst_5 : f32 to vector<16x128xf32>
    %8 = arith.mulf %7, %6 : vector<16x128xf32>
    %9 = math.tanh %8 : vector<16x128xf32>
    %cst_6 = arith.constant 5.000000e-01 : f32
    %10 = vector.broadcast %cst_6 : f32 to vector<16x128xf32>
    %11 = arith.mulf %10, %9 : vector<16x128xf32>
    %cst_7 = arith.constant 5.000000e-01 : f32
    %12 = vector.broadcast %cst_7 : f32 to vector<16x128xf32>
    %13 = arith.addf %11, %12 : vector<16x128xf32>
    %14 = arith.truncf %13 : vector<16x128xf32> to vector<16x128xbf16>
    %c0_8 = arith.constant 0 : index
    %c0_9 = arith.constant 0 : index
    %15 = vector.load %arg4[%c0_8, %c0_9] : memref<128x256xbf16, #tpu.memory_space<vmem>>, vector<128x256xbf16>
    %cst_10 = arith.constant dense<0.000000e+00> : vector<16x256xf32>
    %16 = tpu.matmul %14, %15, %cst_10 {dimension_numbers = #tpu.dot_dimension_numbers<[1], [0], [0], [1], [0, 0, 1, 1], [], []>} : vector<16x128xbf16>, vector<128x256xbf16>, vector<16x256xf32> -> vector<16x256xf32>
    %c0_11 = arith.constant 0 : index
    %c0_12 = arith.constant 0 : index
    %17 = vector.load %arg5[%c0_11, %c0_12] : memref<1x256xf32, #tpu.memory_space<vmem>>, vector<1x256xf32>
    %18 = vector.broadcast %17 : vector<1x256xf32> to vector<16x256xf32>
    %19 = arith.addf %16, %18 : vector<16x256xf32>
    %cst_13 = arith.constant 5.000000e-01 : f32
    %20 = vector.broadcast %cst_13 : f32 to vector<16x256xf32>
    %21 = arith.mulf %20, %19 : vector<16x256xf32>
    %22 = math.tanh %21 : vector<16x256xf32>
    %cst_14 = arith.constant 5.000000e-01 : f32
    %23 = vector.broadcast %cst_14 : f32 to vector<16x256xf32>
    %24 = arith.mulf %23, %22 : vector<16x256xf32>
    %cst_15 = arith.constant 5.000000e-01 : f32
    %25 = vector.broadcast %cst_15 : f32 to vector<16x256xf32>
    %26 = arith.addf %24, %25 : vector<16x256xf32>
    %27 = arith.truncf %26 : vector<16x256xf32> to vector<16x256xbf16>
    %c0_16 = arith.constant 0 : index
    %c0_17 = arith.constant 0 : index
    %28 = vector.load %arg6[%c0_16, %c0_17] : memref<256x128xbf16, #tpu.memory_space<vmem>>, vector<256x128xbf16>
    %cst_18 = arith.constant dense<0.000000e+00> : vector<16x128xf32>
    %29 = tpu.matmul %27, %28, %cst_18 {dimension_numbers = #tpu.dot_dimension_numbers<[1], [0], [0], [1], [0, 0, 1, 1], [], []>} : vector<16x256xbf16>, vector<256x128xbf16>, vector<16x128xf32> -> vector<16x128xf32>
    %c0_19 = arith.constant 0 : index
    %c0_20 = arith.constant 0 : index
    %30 = vector.load %arg7[%c0_19, %c0_20] : memref<1x128xf32, #tpu.memory_space<vmem>>, vector<1x128xf32>
    %31 = vector.broadcast %30 : vector<1x128xf32> to vector<16x128xf32>
    %32 = arith.addf %29, %31 : vector<16x128xf32>
    %cst_21 = arith.constant 5.000000e-01 : f32
    %33 = vector.broadcast %cst_21 : f32 to vector<16x128xf32>
    %34 = arith.mulf %33, %32 : vector<16x128xf32>
    %35 = math.tanh %34 : vector<16x128xf32>
    %cst_22 = arith.constant 5.000000e-01 : f32
    %36 = vector.broadcast %cst_22 : f32 to vector<16x128xf32>
    %37 = arith.mulf %36, %35 : vector<16x128xf32>
    %cst_23 = arith.constant 5.000000e-01 : f32
    %38 = vector.broadcast %cst_23 : f32 to vector<16x128xf32>
    %39 = arith.addf %37, %38 : vector<16x128xf32>
    %40 = arith.truncf %39 : vector<16x128xf32> to vector<16x128xbf16>
    %c0_24 = arith.constant 0 : index
    %c0_25 = arith.constant 0 : index
    %41 = vector.load %arg8[%c0_24, %c0_25] : memref<8x128xbf16, #tpu.memory_space<vmem>>, vector<8x128xbf16>
    %cst_26 = arith.constant dense<0.000000e+00> : vector<8x16xf32>
    %42 = tpu.matmul %41, %40, %cst_26 {dimension_numbers = #tpu.dot_dimension_numbers<[1], [1], [0], [0], [0, 0, 1, 0], [], []>} : vector<8x128xbf16>, vector<16x128xbf16>, vector<8x16xf32> -> vector<8x16xf32>
    %43 = vector.extract_strided_slice %42 {offsets = [0, 0], sizes = [1, 16], strides = [1, 1]} : vector<8x16xf32> to vector<1x16xf32>
    %c0_27 = arith.constant 0 : index
    %c0_28 = arith.constant 0 : index
    %44 = vector.load %arg9[%c0_27, %c0_28] : memref<1x1xf32, #tpu.memory_space<vmem>>, vector<1x1xf32>
    %45 = vector.broadcast %44 : vector<1x1xf32> to vector<1x16xf32>
    %46 = arith.addf %43, %45 : vector<1x16xf32>
    %47 = vector.shape_cast %46 : vector<1x16xf32> to vector<1x1x16xf32>
    %c0_29 = arith.constant 0 : index
    %c0_30 = arith.constant 0 : index
    %c0_31 = arith.constant 0 : index
    %48 = vector.load %arg10[%c0_29, %c0_30, %c0_31] : memref<1x1x16xf32, #tpu.memory_space<vmem>>, vector<1x1x16xf32>
    tpu.vector_store %arg10[%c0_29, %c0_30, %c0_31], %47 {strides = array<i32>} : memref<1x1x16xf32, #tpu.memory_space<vmem>>, vector<1x1x16xf32>,
    return
  }
  func.func @transform_0(%arg0: i32) -> (i32, i32) {
    %c0_i32 = arith.constant 0 : i32
    %c0_i32_0 = arith.constant 0 : i32
    return %arg0, %c0_i32 : i32, i32
  }
  func.func @transform_1(%arg0: i32) -> (i32, i32) {
    %c0_i32 = arith.constant 0 : i32
    %c0_i32_0 = arith.constant 0 : i32
    %c0_i32_1 = arith.constant 0 : i32
    return %c0_i32, %c0_i32_0 : i32, i32
  }
  func.func @transform_2(%arg0: i32) -> (i32, i32) {
    %c0_i32 = arith.constant 0 : i32
    %c0_i32_0 = arith.constant 0 : i32
    %c0_i32_1 = arith.constant 0 : i32
    return %c0_i32, %c0_i32_0 : i32, i32
  }
  func.func @transform_3(%arg0: i32) -> (i32, i32) {
    %c0_i32 = arith.constant 0 : i32
    %c0_i32_0 = arith.constant 0 : i32
    %c0_i32_1 = arith.constant 0 : i32
    return %c0_i32, %c0_i32_0 : i32, i32
  }
  func.func @transform_4(%arg0: i32) -> (i32, i32) {
    %c0_i32 = arith.constant 0 : i32
    %c0_i32_0 = arith.constant 0 : i32
    %c0_i32_1 = arith.constant 0 : i32
    return %c0_i32, %c0_i32_0 : i32, i32
  }
  func.func @transform_5(%arg0: i32) -> (i32, i32) {
    %c0_i32 = arith.constant 0 : i32
    %c0_i32_0 = arith.constant 0 : i32
    %c0_i32_1 = arith.constant 0 : i32
    return %c0_i32, %c0_i32_0 : i32, i32
  }
  func.func @transform_6(%arg0: i32) -> (i32, i32) {
    %c0_i32 = arith.constant 0 : i32
    %c0_i32_0 = arith.constant 0 : i32
    %c0_i32_1 = arith.constant 0 : i32
    return %c0_i32, %c0_i32_0 : i32, i32
  }
  func.func @transform_7(%arg0: i32) -> (i32, i32) {
    %c0_i32 = arith.constant 0 : i32
    %c0_i32_0 = arith.constant 0 : i32
    %c0_i32_1 = arith.constant 0 : i32
    return %c0_i32, %c0_i32_0 : i32, i32
  }
  func.func @transform_8(%arg0: i32) -> (i32, i32) {
    %c0_i32 = arith.constant 0 : i32
    %c0_i32_0 = arith.constant 0 : i32
    %c0_i32_1 = arith.constant 0 : i32
    return %c0_i32, %c0_i32_0 : i32, i32
  }
  func.func @transform_9(%arg0: i32) -> (i32, i32, i32) {
    %c0_i32 = arith.constant 0 : i32
    %c0_i32_0 = arith.constant 0 : i32
    %c0_i32_1 = arith.constant 0 : i32
    return %arg0, %c0_i32, %c0_i32_0 : i32, i32, i32
  }
}

</mosaic_0001>

<llo_original>
// kernel: fc_regression_forward.1
$region0: #{fc_regression_forward.1}
  #allocation0 [shape = 'u32[]', space=smem, size = 0x4, offset = 0x4, fixed_abs, tag = 'smem constant byte address 0x4 - core index']
  #allocation1 [shape = 'u32[144,128]{1,0:T(1,128)}', space=vmem, size = 0x12000, scoped, tag = 'internal scratch']
  #allocation2 [shape = 'f32[1,1]{1,0:T(1,128)S(1)}', space=vmem, size = 0x200, scoped, tag = 'scoped memory for fc_regression_forward.1']
  %s0 = inlined_call_operand.vmem [shape: f32[40,32], index: 0, kind: input, shape index: {}]
  %s1 = inlined_call_operand.vmem [shape: bf16[32,128], index: 1, kind: input, shape index: {}]
  %s2 = inlined_call_operand.vmem [shape: f32[1,128], index: 2, kind: input, shape index: {}]
  %s3 = inlined_call_operand.hbm [shape: bf16[128,256], index: 3, kind: input, shape index: {}]
  %s4 = inlined_call_operand.vmem [shape: f32[1,256], index: 4, kind: input, shape index: {}]
  %s5 = inlined_call_operand.hbm [shape: bf16[256,128], index: 5, kind: input, shape index: {}]
  %s6 = inlined_call_operand.vmem [shape: f32[1,128], index: 6, kind: input, shape index: {}]
  %s7 = inlined_call_operand.vmem [shape: bf16[8,128], index: 7, kind: input, shape index: {}]
  %s8 = inlined_call_operand.<no memory space> [shape: f32[1,1], index: 8, kind: input, shape index: {}]
  %s9 = inlined_call_operand.vmem [shape: f32[3,1,16], index: 9, kind: output, shape index: {}]
  %s10 = sld [smem:[#allocation0]]
  $region77: #{fc_regression_forward.1} parent=0
    _
  %s12 = ssub.s32 1, %s10
  %s13 = scalar_select 0, %s12, %s10
  %v14 = vstv %s8
  %15 = vst [vmem:[#allocation2] sm:$0x1] %v14
  $region1: #{fc_regression_forward.1} parent=0
    #allocation3 [shape = 'u8[65536]{0}', space=vmem, size = 0x10000, scoped, tag = 'input window, operand 3, single buffered']
    #allocation4 [shape = 's32[2]{0}', space=sflag, size = 0x8, scoped, tag = 'scoped memory for fc_regression_forward.1']
    #allocation5 [shape = 'u8[65536]{0}', space=vmem, size = 0x10000, scoped, tag = 'input window, operand 5, single buffered']
    #allocation6 [shape = 's32[1]{0}', space=sflag, size = 0x4, scoped, tag = 'scoped memory for fc_regression_forward.1']
    %16 = vsyncpa [#allocation4], 0
    %17 = vsyncpa [#allocation6], 0
    loop: start=0, step=1, limit=5
    $region2: #{fc_regression_forward.1} parent=1 // loop_pre_header
      _
    $region3: #{fc_regression_forward.1} parent=1 // loop_header
      %s19 = sphi 0, %s23
      %p20 = scmp.ge.s32.totalorder %s19, 5
      %s29 = sphi 0, %s31
      %s32 = sphi 0, %s29
      %s33 = sphi 0, %s32
      %s49 = sphi 0, %s33
      %s53 = sphi 0, %s53
      %s55 = sphi 0, %s53
      %s56 = sphi 0, %s55
      %s70 = sphi 0, %s56
      %s74 = sphi 0, %s74
      %s76 = sphi 0, %s74
      %s77 = sphi 0, %s76
      %s91 = sphi 0, %s77
      %s95 = sphi 0, %s95
      %s97 = sphi 0, %s95
      %s98 = sphi 0, %s97
      %s112 = sphi 0, %s98
      %s116 = sphi 0, %s116
      %s118 = sphi 0, %s116
      %s119 = sphi 0, %s118
      %s133 = sphi 0, %s119
      %s137 = sphi 0, %s137
      %s139 = sphi 0, %s137
      %s140 = sphi 0, %s139
      %s154 = sphi 0, %s140
      %s158 = sphi 0, %s158
      %s160 = sphi 0, %s158
      %s161 = sphi 0, %s160
      %s175 = sphi 0, %s161
      %s179 = sphi 0, %s179
      %s181 = sphi 0, %s179
      %s182 = sphi 0, %s181
      %s196 = sphi 0, %s182
      %s200 = sphi 0, %s200
      %s202 = sphi 0, %s200
      %s203 = sphi 0, %s202
      %s217 = sphi 0, %s203
      %s223 = sphi 0, %s225
      %s226 = sphi 0, %s223
      %s227 = sphi 0, %s226
      %s243 = sphi 0, %s227
    $region4: #{fc_regression_forward.1} parent=1 // loop_header_branch
      %22 = sbr.rel (%p20) target = $region8
    $region5: #{fc_regression_forward.1} parent=1 // loop_body
      %s24 = ssub.s32 %s19, 1
      %s25 = ssub.s32 %s19, 2
      %s26 = sadd.s32 %s19, 1
      %s27 = ssub.s32 %s19, %s26
      %p28 = scmp.eq.s32.totalorder %s27, 0
      %s30 = sadd.s32 %s29, 1
      %s31 = scalar_select %p28, %s29, %s30
      %p34 = pneg %p28
      %p35 = scmp.eq.s32.totalorder %s19, 2
      %p36 = por %p34, %p35
      %p37 = scmp.ne.s32.totalorder %s29, %s32
      %p38 = scmp.eq.s32.totalorder %s19, 0
      %p39 = por %p37, %p38
      %p40 = scmp.ne.s32.totalorder %s29, %s32
      %p41 = scmp.eq.s32.totalorder %s24, 2
      %p42 = por %p40, %p41
      %p43 = scmp.ne.s32.totalorder %s32, %s33
      %p44 = scmp.eq.s32.totalorder %s24, 0
      %p45 = por %p43, %p44
      %p46 = scmp.ne.s32.totalorder %s32, %s33
      %p47 = scmp.eq.s32.totalorder %s25, 2
      %p48 = por %p46, %p47
      %p50 = scmp.ne.s32.totalorder %s33, %s49
      %p51 = scmp.eq.s32.totalorder %s25, 0
      %p52 = por %p50, %p51
      %s54 = sadd.s32 %s53, 1
      %p57 = scmp.eq.s32.totalorder %s19, 2
      %p58 = scmp.ne.s32.totalorder %s53, %s55
      %p59 = scmp.eq.s32.totalorder %s19, 0
      %p60 = por %p58, %p59
      %p61 = scmp.ne.s32.totalorder %s53, %s55
      %p62 = scmp.eq.s32.totalorder %s24, 2
      %p63 = por %p61, %p62
      %p64 = scmp.ne.s32.totalorder %s55, %s56
      %p65 = scmp.eq.s32.totalorder %s24, 0
      %p66 = por %p64, %p65
      %p67 = scmp.ne.s32.totalorder %s55, %s56
      %p68 = scmp.eq.s32.totalorder %s25, 2
      %p69 = por %p67, %p68
      %p71 = scmp.ne.s32.totalorder %s56, %s70
      %p72 = scmp.eq.s32.totalorder %s25, 0
      %p73 = por %p71, %p72
      %s75 = sadd.s32 %s74, 1
      %p78 = scmp.eq.s32.totalorder %s19, 2
      %p79 = scmp.ne.s32.totalorder %s74, %s76
      %p80 = scmp.eq.s32.totalorder %s19, 0
      %p81 = por %p79, %p80
      %p82 = scmp.ne.s32.totalorder %s74, %s76
      %p83 = scmp.eq.s32.totalorder %s24, 2
      %p84 = por %p82, %p83
      %p85 = scmp.ne.s32.totalorder %s76, %s77
      %p86 = scmp.eq.s32.totalorder %s24, 0
      %p87 = por %p85, %p86
      %p88 = scmp.ne.s32.totalorder %s76, %s77
      %p89 = scmp.eq.s32.totalorder %s25, 2
      %p90 = por %p88, %p89
      %p92 = scmp.ne.s32.totalorder %s77, %s91
      %p93 = scmp.eq.s32.totalorder %s25, 0
      %p94 = por %p92, %p93
      %s96 = sadd.s32 %s95, 1
      %p99 = scmp.eq.s32.totalorder %s19, 2
      %p100 = scmp.ne.s32.totalorder %s95, %s97
      %p101 = scmp.eq.s32.totalorder %s19, 0
      %p102 = por %p100, %p101
      %p103 = scmp.ne.s32.totalorder %s95, %s97
      %p104 = scmp.eq.s32.totalorder %s24, 2
      %p105 = por %p103, %p104
      %p106 = scmp.ne.s32.totalorder %s97, %s98
      %p107 = scmp.eq.s32.totalorder %s24, 0
      %p108 = por %p106, %p107
      %p109 = scmp.ne.s32.totalorder %s97, %s98
      %p110 = scmp.eq.s32.totalorder %s25, 2
      %p111 = por %p109, %p110
      %p113 = scmp.ne.s32.totalorder %s98, %s112
      %p114 = scmp.eq.s32.totalorder %s25, 0
      %p115 = por %p113, %p114
      %s117 = sadd.s32 %s116, 1
      %p120 = scmp.eq.s32.totalorder %s19, 2
      %p121 = scmp.ne.s32.totalorder %s116, %s118
      %p122 = scmp.eq.s32.totalorder %s19, 0
      %p123 = por %p121, %p122
      %p124 = scmp.ne.s32.totalorder %s116, %s118
      %p125 = scmp.eq.s32.totalorder %s24, 2
      %p126 = por %p124, %p125
      %p127 = scmp.ne.s32.totalorder %s118, %s119
      %p128 = scmp.eq.s32.totalorder %s24, 0
      %p129 = por %p127, %p128
      %p130 = scmp.ne.s32.totalorder %s118, %s119
      %p131 = scmp.eq.s32.totalorder %s25, 2
      %p132 = por %p130, %p131
      %p134 = scmp.ne.s32.totalorder %s119, %s133
      %p135 = scmp.eq.s32.totalorder %s25, 0
      %p136 = por %p134, %p135
      %s138 = sadd.s32 %s137, 1
      %p141 = scmp.eq.s32.totalorder %s19, 2
      %p142 = scmp.ne.s32.totalorder %s137, %s139
      %p143 = scmp.eq.s32.totalorder %s19, 0
      %p144 = por %p142, %p143
      %p145 = scmp.ne.s32.totalorder %s137, %s139
      %p146 = scmp.eq.s32.totalorder %s24, 2
      %p147 = por %p145, %p146
      %p148 = scmp.ne.s32.totalorder %s139, %s140
      %p149 = scmp.eq.s32.totalorder %s24, 0
      %p150 = por %p148, %p149
      %p151 = scmp.ne.s32.totalorder %s139, %s140
      %p152 = scmp.eq.s32.totalorder %s25, 2
      %p153 = por %p151, %p152
      %p155 = scmp.ne.s32.totalorder %s140, %s154
      %p156 = scmp.eq.s32.totalorder %s25, 0
      %p157 = por %p155, %p156
      %s159 = sadd.s32 %s158, 1
      %p162 = scmp.eq.s32.totalorder %s19, 2
      %p163 = scmp.ne.s32.totalorder %s158, %s160
      %p164 = scmp.eq.s32.totalorder %s19, 0
      %p165 = por %p163, %p164
      %p166 = scmp.ne.s32.totalorder %s158, %s160
      %p167 = scmp.eq.s32.totalorder %s24, 2
      %p168 = por %p166, %p167
      %p169 = scmp.ne.s32.totalorder %s160, %s161
      %p170 = scmp.eq.s32.totalorder %s24, 0
      %p171 = por %p169, %p170
      %p172 = scmp.ne.s32.totalorder %s160, %s161
      %p173 = scmp.eq.s32.totalorder %s25, 2
      %p174 = por %p172, %p173
      %p176 = scmp.ne.s32.totalorder %s161, %s175
      %p177 = scmp.eq.s32.totalorder %s25, 0
      %p178 = por %p176, %p177
      %s180 = sadd.s32 %s179, 1
      %p183 = scmp.eq.s32.totalorder %s19, 2
      %p184 = scmp.ne.s32.totalorder %s179, %s181
      %p185 = scmp.eq.s32.totalorder %s19, 0
      %p186 = por %p184, %p185
      %p187 = scmp.ne.s32.totalorder %s179, %s181
      %p188 = scmp.eq.s32.totalorder %s24, 2
      %p189 = por %p187, %p188
      %p190 = scmp.ne.s32.totalorder %s181, %s182
      %p191 = scmp.eq.s32.totalorder %s24, 0
      %p192 = por %p190, %p191
      %p193 = scmp.ne.s32.totalorder %s181, %s182
      %p194 = scmp.eq.s32.totalorder %s25, 2
      %p195 = por %p193, %p194
      %p197 = scmp.ne.s32.totalorder %s182, %s196
      %p198 = scmp.eq.s32.totalorder %s25, 0
      %p199 = por %p197, %p198
      %s201 = sadd.s32 %s200, 1
      %p204 = scmp.eq.s32.totalorder %s19, 2
      %p205 = scmp.ne.s32.totalorder %s200, %s202
      %p206 = scmp.eq.s32.totalorder %s19, 0
      %p207 = por %p205, %p206
      %p208 = scmp.ne.s32.totalorder %s200, %s202
      %p209 = scmp.eq.s32.totalorder %s24, 2
      %p210 = por %p208, %p209
      %p211 = scmp.ne.s32.totalorder %s202, %s203
      %p212 = scmp.eq.s32.totalorder %s24, 0
      %p213 = por %p211, %p212
      %p214 = scmp.ne.s32.totalorder %s202, %s203
      %p215 = scmp.eq.s32.totalorder %s25, 2
      %p216 = por %p214, %p215
      %p218 = scmp.ne.s32.totalorder %s203, %s217
      %p219 = scmp.eq.s32.totalorder %s25, 0
      %p220 = por %p218, %p219
      %s221 = ssub.s32 %s19, %s26
      %p222 = scmp.eq.s32.totalorder %s221, 0
      %s224 = sadd.s32 %s223, 1
      %s225 = scalar_select %p222, %s223, %s224
      %p228 = pneg %p222
      %p229 = scmp.eq.s32.totalorder %s19, 2
      %p230 = por %p228, %p229
      %p231 = scmp.ne.s32.totalorder %s223, %s226
      %p232 = scmp.eq.s32.totalorder %s19, 0
      %p233 = por %p231, %p232
      %p234 = scmp.ne.s32.totalorder %s223, %s226
      %p235 = scmp.eq.s32.totalorder %s24, 2
      %p236 = por %p234, %p235
      %p237 = scmp.ne.s32.totalorder %s226, %s227
      %p238 = scmp.eq.s32.totalorder %s24, 0
      %p239 = por %p237, %p238
      %p240 = scmp.ne.s32.totalorder %s226, %s227
      %p241 = scmp.eq.s32.totalorder %s25, 2
      %p242 = por %p240, %p241
      %p244 = scmp.ne.s32.totalorder %s227, %s243
      %p245 = scmp.eq.s32.totalorder %s25, 0
      %p246 = por %p244, %p245
      %p247 = scmp.le.s32.totalorder 1, %s19
      %p248 = scmp.lt.s32.totalorder %s19, 4
      %p249 = pnand %p247, %p248
      %p250 = pneg %p249
      // Predicated region
      $region9: #{fc_regression_forward.1} parent=5 // pred_check
        _
      $region10: #{fc_regression_forward.1} parent=5 // pred_check_branch
        %252 = sbr.rel (%p249) target = $region12
      $region11: #{fc_regression_forward.1} parent=5 // pred_region
        %s253 = ssub.s32 %s19, 1
        // Predicated region
        $region13: #{fc_regression_forward.1} parent=11 // pred_check
          %p254 = pneg %p66
        $region14: #{fc_regression_forward.1} parent=11 // pred_check_branch
          %256 = sbr.rel (%p254) target = $region16
        $region15: #{fc_regression_forward.1} parent=11 // pred_region
          _
        $region16: #{fc_regression_forward.1} parent=11 // pred_fallthru
          _
        // Predicated region
        $region17: #{fc_regression_forward.1} parent=11 // pred_check
          %p257 = pneg %p87
        $region18: #{fc_regression_forward.1} parent=11 // pred_check_branch
          %259 = sbr.rel (%p257) target = $region20
        $region19: #{fc_regression_forward.1} parent=11 // pred_region
          _
        $region20: #{fc_regression_forward.1} parent=11 // pred_fallthru
          _
        // Predicated region
        $region21: #{fc_regression_forward.1} parent=11 // pred_check
          %p260 = pneg %p108
        $region22: #{fc_regression_forward.1} parent=11 // pred_check_branch
          %262 = sbr.rel (%p260) target = $region24
        $region23: #{fc_regression_forward.1} parent=11 // pred_region
          %s264 = ssub.s32 2048, 2048
          %265 = vsyncadd [#allocation4], %s264
          %s266 = sshll.u32 [#allocation3], 4
          %s267 = int_to_ptr.vmem [resolvable:$true] %s266
          %272 = dma.hbm_to_vmem [thread:$0]  %s3, 2048, %s267, [#allocation4], 128, 128, 8
        $region24: #{fc_regression_forward.1} parent=11 // pred_fallthru
          _
        // Predicated region
        $region25: #{fc_regression_forward.1} parent=11 // pred_check
          %p273 = pneg %p129
        $region26: #{fc_regression_forward.1} parent=11 // pred_check_branch
          %275 = sbr.rel (%p273) target = $region28
        $region27: #{fc_regression_forward.1} parent=11 // pred_region
          _
        $region28: #{fc_regression_forward.1} parent=11 // pred_fallthru
          _
        // Predicated region
        $region29: #{fc_regression_forward.1} parent=11 // pred_check
          %p276 = pneg %p150
        $region30: #{fc_regression_forward.1} parent=11 // pred_check_branch
          %278 = sbr.rel (%p276) target = $region32
        $region31: #{fc_regression_forward.1} parent=11 // pred_region
          %s280 = ssub.s32 2048, 2048
          %281 = vsyncadd [#allocation6], %s280
          %s282 = sshll.u32 [#allocation5], 4
          %s283 = int_to_ptr.vmem [resolvable:$true] %s282
          %288 = dma.hbm_to_vmem [thread:$0]  %s5, 2048, %s283, [#allocation6], 64, 64, 4
        $region32: #{fc_regression_forward.1} parent=11 // pred_fallthru
          _
        // Predicated region
        $region33: #{fc_regression_forward.1} parent=11 // pred_check
          %p289 = pneg %p171
        $region34: #{fc_regression_forward.1} parent=11 // pred_check_branch
          %291 = sbr.rel (%p289) target = $region36
        $region35: #{fc_regression_forward.1} parent=11 // pred_region
          _
        $region36: #{fc_regression_forward.1} parent=11 // pred_fallthru
          _
        // Predicated region
        $region37: #{fc_regression_forward.1} parent=11 // pred_check
          %p292 = pneg %p192
        $region38: #{fc_regression_forward.1} parent=11 // pred_check_branch
          %294 = sbr.rel (%p292) target = $region40
        $region39: #{fc_regression_forward.1} parent=11 // pred_region
          _
        $region40: #{fc_regression_forward.1} parent=11 // pred_fallthru
          _
        // Predicated region
        $region41: #{fc_regression_forward.1} parent=11 // pred_check
          %p295 = pneg %p213
        $region42: #{fc_regression_forward.1} parent=11 // pred_check_branch
          %297 = sbr.rel (%p295) target = $region44
        $region43: #{fc_regression_forward.1} parent=11 // pred_region
          _
        $region44: #{fc_regression_forward.1} parent=11 // pred_fallthru
          _
      $region12: #{fc_regression_forward.1} parent=5 // pred_fallthru
        _
      %p298 = scmp.lt.s32.totalorder %s19, 3
      // Predicated region
      $region45: #{fc_regression_forward.1} parent=5 // pred_check
        %p299 = pneg %p298
      $region46: #{fc_regression_forward.1} parent=5 // pred_check_branch
        %301 = sbr.rel (%p299) target = $region48
      $region47: #{fc_regression_forward.1} parent=5 // pred_region
        // Predicated region
        $region49: #{fc_regression_forward.1} parent=47 // pred_check
          %p302 = pneg %p39
        $region50: #{fc_regression_forward.1} parent=47 // pred_check_branch
          %304 = sbr.rel (%p302) target = $region52
        $region51: #{fc_regression_forward.1} parent=47 // pred_region
          %s305 = smul.u32 2, %s19
          %s306 = ssub.s32 5, %s305
          %p307 = scmp.lt.s32.totalorder %s306, 2
          %s308 = scalar_select %p307, %s306, 2
          %s309 = smul.u32 128, %s308
          %p310 = scmp.lt.s32.totalorder %s305, 4
          %s311 = scalar_select %p310, %s305, 4
          %s312 = smul.addr %s311, 8
          %s313 = scalar_lea.vmem %s0, %s312
          %s314 = smul.u32 2, %s19
          %s315 = ssub.s32 5, %s314
          %p316 = scmp.lt.s32.totalorder %s315, 2
          %s317 = scalar_select %p316, %s315, 2
          %s318 = smul.u32 128, %s317
        $region52: #{fc_regression_forward.1} parent=47 // pred_fallthru
          _
      $region48: #{fc_regression_forward.1} parent=5 // pred_fallthru
        _
      %p319 = scmp.le.s32.totalorder 1, %s19
      %p320 = scmp.lt.s32.totalorder %s19, 4
      %p321 = pnand %p319, %p320
      %p322 = pneg %p321
      // Predicated region
      $region53: #{fc_regression_forward.1} parent=5 // pred_check
        _
      $region54: #{fc_regression_forward.1} parent=5 // pred_check_branch
        %324 = sbr.rel (%p321) target = $region56
      $region55: #{fc_regression_forward.1} parent=5 // pred_region
        %s325 = ssub.s32 %s19, 1
        // Predicated region
        $region57: #{fc_regression_forward.1} parent=55 // pred_check
          %p326 = pneg %p108
        $region58: #{fc_regression_forward.1} parent=55 // pred_check_branch
          %328 = sbr.rel (%p326) target = $region60
        $region59: #{fc_regression_forward.1} parent=55 // pred_region
          %329 = dma.done [#allocation4], 2048
        $region60: #{fc_regression_forward.1} parent=55 // pred_fallthru
          _
        // Predicated region
        $region61: #{fc_regression_forward.1} parent=55 // pred_check
          %p330 = pneg %p150
        $region62: #{fc_regression_forward.1} parent=55 // pred_check_branch
          %332 = sbr.rel (%p330) target = $region64
        $region63: #{fc_regression_forward.1} parent=55 // pred_region
          %333 = dma.done [#allocation6], 2048
        $region64: #{fc_regression_forward.1} parent=55 // pred_fallthru
          _
        %s334 = smul.u32 2, %s24
        %s335 = ssub.s32 5, %s334
        %p336 = scmp.lt.s32.totalorder %s335, 2
        %s337 = scalar_select %p336, %s335, 2
        %s338 = smul.u32 128, %s337
        %p339 = scmp.lt.s32.totalorder %s334, 4
        %s340 = scalar_select %p339, %s334, 4
        %s341 = smul.addr %s340, 8
        %s342 = scalar_lea.vmem %s0, %s341
        %p343 = pneg %p45
        %p344 = pneg %p42
        %p345 = pneg %p66
        %p346 = pneg %p63
        %p347 = pneg %p87
        %p348 = pneg %p84
        %p349 = pneg %p108
        %p350 = pneg %p105
        %p351 = pneg %p129
        %p352 = pneg %p126
        %p353 = pneg %p150
        %p354 = pneg %p147
        %p355 = pneg %p171
        %p356 = pneg %p168
        %p357 = pneg %p192
        %p358 = pneg %p189
        %p359 = pneg %p213
        %p360 = pneg %p210
        %p361 = pneg %p239
        %p362 = pneg %p236
        %p363 = scmp.lt.s32.totalorder %s24, 2
        %s364 = scalar_select %p363, %s24, 2
        %s365 = scalar_lea.vmem %s9, %s364
        %s366 = smul.u32 2, %s24
        %s367 = ssub.s32 5, %s366
        %p368 = scmp.lt.s32.totalorder %s367, 2
        %s369 = scalar_select %p368, %s367, 2
        %s370 = smul.u32 128, %s369
        %p371 = scmp.lt.s32.totalorder %s366, 4
        %s372 = scalar_select %p371, %s366, 4
        %s373 = smul.addr %s372, 8
        %s374 = scalar_lea.vmem %s0, %s373
        %s375 = smul.u32 2, %s24
        %s376 = ssub.s32 5, %s375
        %p377 = scmp.lt.s32.totalorder %s376, 2
        %s378 = scalar_select %p377, %s376, 2
        %s379 = smul.u32 128, %s378
        %p380 = scmp.lt.s32.totalorder %s24, 2
        %s381 = scalar_select %p380, %s24, 2
        %s382 = scalar_lea.vmem %s9, %s381
        %v384 = vld [vmem:[%s374] sm:$0xff]
        %v385 = vld [vmem:[%s374 + $0x8] sm:$0xff]
        %v386 = vpack.c.bf16 %v385, %v384
        %v387 = vld [vmem:[%s1] sm:$0xf]
        %v388 = vld [vmem:[%s1 + $0x4] sm:$0xf]
        %v389 = vld [vmem:[%s1 + $0x8] sm:$0xf]
        %v390 = vld [vmem:[%s1 + $0xc] sm:$0xf]
        %v391 = vld [vmem:[%s2] sm:$0x1]
        %v393 = vlaneseq
        %v394 = vshrl.u32 %v393, 7
        %v395 = vsub.s32 0, %v394
        %v396 = vrot.slane %v391, %v395
        %v402 = vunpack.c.l.b16 %v387
        %v403 = vunpack.c.l.b16 %v388
        %v404 = vunpack.c.l.b16 %v389
        %v405 = vunpack.c.l.b16 %v390
        %v406 = vpack.c.b16 %v403, %v402
        %v407 = vpack.c.b16 %v405, %v404
        %vm410 = vcmask 261120
        %v412 = vsel %vm410, %v386, 0
        %414 = vmatprep.subr.bf16.mxu0 0
        %415 = vmatpush1.bf16.msra.mxu0 0
        %416 = vmatprep.subr.bf16.mxu0 0
        %417 = vmatpush1.bf16.msra.mxu0 0
        %418 = vmatprep.subr.bf16.mxu0 0
        %419 = vmatpush1.bf16.msra.mxu0 0
        %420 = vmatprep.subr.bf16.mxu0 0
        %421 = vmatpush1.bf16.msra.mxu0 0
        %422 = vmatprep.subr.bf16.mxu0 0
        %423 = vmatpush1.bf16.msra.mxu0 0
        %424 = vmatprep.subr.bf16.mxu0 0
        %425 = vmatpush1.bf16.msra.mxu0 0
        %426 = vmatprep.subr.bf16.mxu0 0
        %427 = vmatpush1.bf16.msra.mxu0 %v407
        %428 = vmatprep.subr.bf16.mxu0 0
        %429 = vmatpush1.bf16.msra.mxu0 %v406
        %430 = vmatprep.subr.bf16.mxu0 0
        %431 = vmatpush2.bf16.msra.mxu0 0
        %432 = vmatprep.subr.bf16.mxu0 0
        %433 = vmatpush2.bf16.msra.mxu0 0
        %434 = vmatprep.subr.bf16.mxu0 0
        %435 = vmatpush2.bf16.msra.mxu0 0
        %436 = vmatprep.subr.bf16.mxu0 0
        %437 = vmatpush2.bf16.msra.mxu0 0
        %438 = vmatprep.subr.bf16.mxu0 0
        %439 = vmatpush2.bf16.msra.mxu0 0
        %440 = vmatprep.subr.bf16.mxu0 0
        %441 = vmatpush2.bf16.msra.mxu0 0
        %442 = vmatprep.subr.bf16.mxu0 0
        %443 = vmatpush2.bf16.msra.mxu0 0
        %444 = vmatprep.subr.bf16.mxu0 0
        %445 = vmatpush2.bf16.msra.mxu0 0
        %446 = vmatprep.mubr.bf16.mxu0 0
        %447 = vmatmul.mubr.bf16.gmra.mxu0 %v412
        %v448 = vpop.f32.mrf.mxu0
        %v449 = vadd.f32 %v396, %v448
        %v450 = vpop.f32.mrf.mxu0
        %v451 = vpop.f32.mrf.mxu0
        %v452 = vadd.f32 %v396, %v451
        %v453 = vpop.f32.mrf.mxu0
        %454 = vdwg.mxu0
        %v455 = vmul.f32 %v449, 0.5
        %v456 = vmul.f32 %v452, 0.5
        %v457 = vtanh.pop %v455
        %v458 = vtanh.pop %v456
        %v459 = vmul.f32 %v457, 0.5
        %v460 = vmul.f32 %v458, 0.5
        %v461 = vadd.f32 %v459, 0.5
        %v462 = vadd.f32 %v460, 0.5
        %v463 = vpack.c.bf16 %v462, %v461
        %v464 = vld [vmem:[#allocation3] sm:$0xff]
        %v465 = vld [vmem:[#allocation3 + $0x8] sm:$0xff]
        %v466 = vld [vmem:[#allocation3 + $0x10] sm:$0xff]
        %v467 = vld [vmem:[#allocation3 + $0x18] sm:$0xff]
        %v468 = vld [vmem:[#allocation3 + $0x20] sm:$0xff]
        %v469 = vld [vmem:[#allocation3 + $0x28] sm:$0xff]
        %v470 = vld [vmem:[#allocation3 + $0x30] sm:$0xff]
        %v471 = vld [vmem:[#allocation3 + $0x38] sm:$0xff]
        %v472 = vld [vmem:[#allocation3 + $0x40] sm:$0xff]
        %v473 = vld [vmem:[#allocation3 + $0x48] sm:$0xff]
        %v474 = vld [vmem:[#allocation3 + $0x50] sm:$0xff]
        %v475 = vld [vmem:[#allocation3 + $0x58] sm:$0xff]
        %v476 = vld [vmem:[#allocation3 + $0x60] sm:$0xff]
        %v477 = vld [vmem:[#allocation3 + $0x68] sm:$0xff]
        %v478 = vld [vmem:[#allocation3 + $0x70] sm:$0xff]
        %v479 = vld [vmem:[#allocation3 + $0x78] sm:$0xff]
        %v480 = vld [vmem:[%s4] sm:$0x3]
        %v482 = vlaneseq
        %v483 = vshrl.u32 %v482, 7
        %v484 = vsub.s32 0, %v483
        %v485 = vrot.slane %v480, %v484
        %v486 = vlaneseq
        %v487 = vshrl.u32 %v486, 7
        %v488 = vsub.s32 1, %v487
        %v489 = vrot.slane %v480, %v488
        %v508 = vunpack.c.l.b16 %v464
        %v509 = vunpack.c.h.b16 %v464
        %v510 = vunpack.c.l.b16 %v465
        %v511 = vunpack.c.h.b16 %v465
        %v512 = vunpack.c.l.b16 %v466
        %v513 = vunpack.c.h.b16 %v466
        %v514 = vunpack.c.l.b16 %v467
        %v515 = vunpack.c.h.b16 %v467
        %v516 = vunpack.c.l.b16 %v468
        %v517 = vunpack.c.h.b16 %v468
        %v518 = vunpack.c.l.b16 %v469
        %v519 = vunpack.c.h.b16 %v469
        %v520 = vunpack.c.l.b16 %v470
        %v521 = vunpack.c.h.b16 %v470
        %v522 = vunpack.c.l.b16 %v471
        %v523 = vunpack.c.h.b16 %v471
        %v524 = vunpack.c.l.b16 %v472
        %v525 = vunpack.c.h.b16 %v472
        %v526 = vunpack.c.l.b16 %v473
        %v527 = vunpack.c.h.b16 %v473
        %v528 = vunpack.c.l.b16 %v474
        %v529 = vunpack.c.h.b16 %v474
        %v530 = vunpack.c.l.b16 %v475
        %v531 = vunpack.c.h.b16 %v475
        %v532 = vunpack.c.l.b16 %v476
        %v533 = vunpack.c.h.b16 %v476
        %v534 = vunpack.c.l.b16 %v477
        %v535 = vunpack.c.h.b16 %v477
        %v536 = vunpack.c.l.b16 %v478
        %v537 = vunpack.c.h.b16 %v478
        %v538 = vunpack.c.l.b16 %v479
        %v539 = vunpack.c.h.b16 %v479
        %v540 = vpack.c.b16 %v510, %v508
        %v541 = vpack.c.b16 %v511, %v509
        %v542 = vpack.c.b16 %v514, %v512
        %v543 = vpack.c.b16 %v515, %v513
        %v544 = vpack.c.b16 %v518, %v516
        %v545 = vpack.c.b16 %v519, %v517
        %v546 = vpack.c.b16 %v522, %v520
        %v547 = vpack.c.b16 %v523, %v521
        %v548 = vpack.c.b16 %v526, %v524
        %v549 = vpack.c.b16 %v527, %v525
        %v550 = vpack.c.b16 %v530, %v528
        %v551 = vpack.c.b16 %v531, %v529
        %v552 = vpack.c.b16 %v534, %v532
        %v553 = vpack.c.b16 %v535, %v533
        %v554 = vpack.c.b16 %v538, %v536
        %v555 = vpack.c.b16 %v539, %v537
        %572 = vmatprep.subr.bf16.mxu0 %v555
        %573 = vmatpush1.bf16.msra.mxu0 %v554
        %574 = vmatprep.subr.bf16.mxu0 %v553
        %575 = vmatpush1.bf16.msra.mxu0 %v552
        %576 = vmatprep.subr.bf16.mxu0 %v551
        %577 = vmatpush1.bf16.msra.mxu0 %v550
        %578 = vmatprep.subr.bf16.mxu0 %v549
        %579 = vmatpush1.bf16.msra.mxu0 %v548
        %580 = vmatprep.subr.bf16.mxu0 %v547
        %581 = vmatpush1.bf16.msra.mxu0 %v546
        %582 = vmatprep.subr.bf16.mxu0 %v545
        %583 = vmatpush1.bf16.msra.mxu0 %v544
        %584 = vmatprep.subr.bf16.mxu0 %v543
        %585 = vmatpush1.bf16.msra.mxu0 %v542
        %586 = vmatprep.subr.bf16.mxu0 %v541
        %587 = vmatpush1.bf16.msra.mxu0 %v540
        %588 = vmatprep.subr.bf16.mxu0 0
        %589 = vmatpush2.bf16.msra.mxu0 0
        %590 = vmatprep.subr.bf16.mxu0 0
        %591 = vmatpush2.bf16.msra.mxu0 0
        %592 = vmatprep.subr.bf16.mxu0 0
        %593 = vmatpush2.bf16.msra.mxu0 0
        %594 = vmatprep.subr.bf16.mxu0 0
        %595 = vmatpush2.bf16.msra.mxu0 0
        %596 = vmatprep.subr.bf16.mxu0 0
        %597 = vmatpush2.bf16.msra.mxu0 0
        %598 = vmatprep.subr.bf16.mxu0 0
        %599 = vmatpush2.bf16.msra.mxu0 0
        %600 = vmatprep.subr.bf16.mxu0 0
        %601 = vmatpush2.bf16.msra.mxu0 0
        %602 = vmatprep.subr.bf16.mxu0 0
        %603 = vmatpush2.bf16.msra.mxu0 0
        %604 = vmatprep.mubr.bf16.mxu0 0
        %605 = vmatmul.mubr.bf16.gmra.mxu0 %v463
        %v606 = vpop.f32.mrf.mxu0
        %v607 = vadd.f32 %v485, %v606
        %v608 = vpop.f32.mrf.mxu0
        %v609 = vadd.f32 %v489, %v608
        %v610 = vpop.f32.mrf.mxu0
        %v611 = vadd.f32 %v485, %v610
        %v612 = vpop.f32.mrf.mxu0
        %v613 = vadd.f32 %v489, %v612
        %614 = vdwg.mxu0
        %v615 = vmul.f32 %v607, 0.5
        %v616 = vmul.f32 %v609, 0.5
        %v617 = vmul.f32 %v611, 0.5
        %v618 = vmul.f32 %v613, 0.5
        %v619 = vtanh.pop %v615
        %v620 = vtanh.pop %v616
        %v621 = vtanh.pop %v617
        %v622 = vtanh.pop %v618
        %v623 = vmul.f32 %v619, 0.5
        %v624 = vmul.f32 %v620, 0.5
        %v625 = vmul.f32 %v621, 0.5
        %v626 = vmul.f32 %v622, 0.5
        %v627 = vadd.f32 %v623, 0.5
        %v628 = vadd.f32 %v624, 0.5
        %v629 = vadd.f32 %v625, 0.5
        %v630 = vadd.f32 %v626, 0.5
        %v631 = vpack.c.bf16 %v629, %v627
        %v632 = vpack.c.bf16 %v630, %v628
        %v633 = vld [vmem:[#allocation5] sm:$0xf]
        %v634 = vld [vmem:[#allocation5 + $0x4] sm:$0xf]
        %v635 = vld [vmem:[#allocation5 + $0x8] sm:$0xf]
        %v636 = vld [vmem:[#allocation5 + $0xc] sm:$0xf]
        %v637 = vld [vmem:[#allocation5 + $0x10] sm:$0xf]
        %v638 = vld [vmem:[#allocation5 + $0x14] sm:$0xf]
        %v639 = vld [vmem:[#allocation5 + $0x18] sm:$0xf]
        %v640 = vld [vmem:[#allocation5 + $0x1c] sm:$0xf]
        %v641 = vld [vmem:[#allocation5 + $0x20] sm:$0xf]
        %v642 = vld [vmem:[#allocation5 + $0x24] sm:$0xf]
        %v643 = vld [vmem:[#allocation5 + $0x28] sm:$0xf]
        %v644 = vld [vmem:[#allocation5 + $0x2c] sm:$0xf]
        %v645 = vld [vmem:[#allocation5 + $0x30] sm:$0xf]
        %v646 = vld [vmem:[#allocation5 + $0x34] sm:$0xf]
        %v647 = vld [vmem:[#allocation5 + $0x38] sm:$0xf]
        %v648 = vld [vmem:[#allocation5 + $0x3c] sm:$0xf]
        %v649 = vld [vmem:[#allocation5 + $0x40] sm:$0xf]
        %v650 = vld [vmem:[#allocation5 + $0x44] sm:$0xf]
        %v651 = vld [vmem:[#allocation5 + $0x48] sm:$0xf]
        %v652 = vld [vmem:[#allocation5 + $0x4c] sm:$0xf]
        %v653 = vld [vmem:[#allocation5 + $0x50] sm:$0xf]
        %v654 = vld [vmem:[#allocation5 + $0x54] sm:$0xf]
        %v655 = vld [vmem:[#allocation5 + $0x58] sm:$0xf]
        %v656 = vld [vmem:[#allocation5 + $0x5c] sm:$0xf]
        %v657 = vld [vmem:[#allocation5 + $0x60] sm:$0xf]
        %v658 = vld [vmem:[#allocation5 + $0x64] sm:$0xf]
        %v659 = vld [vmem:[#allocation5 + $0x68] sm:$0xf]
        %v660 = vld [vmem:[#allocation5 + $0x6c] sm:$0xf]
        %v661 = vld [vmem:[#allocation5 + $0x70] sm:$0xf]
        %v662 = vld [vmem:[#allocation5 + $0x74] sm:$0xf]
        %v663 = vld [vmem:[#allocation5 + $0x78] sm:$0xf]
        %v664 = vld [vmem:[#allocation5 + $0x7c] sm:$0xf]
        %v665 = vld [vmem:[%s6] sm:$0x1]
        %v667 = vlaneseq
        %v668 = vshrl.u32 %v667, 7
        %v669 = vsub.s32 0, %v668
        %v670 = vrot.slane %v665, %v669
        %v704 = vunpack.c.l.b16 %v633
        %v705 = vunpack.c.l.b16 %v634
        %v706 = vunpack.c.l.b16 %v635
        %v707 = vunpack.c.l.b16 %v636
        %v708 = vunpack.c.l.b16 %v637
        %v709 = vunpack.c.l.b16 %v638
        %v710 = vunpack.c.l.b16 %v639
        %v711 = vunpack.c.l.b16 %v640
        %v712 = vunpack.c.l.b16 %v641
        %v713 = vunpack.c.l.b16 %v642
        %v714 = vunpack.c.l.b16 %v643
        %v715 = vunpack.c.l.b16 %v644
        %v716 = vunpack.c.l.b16 %v645
        %v717 = vunpack.c.l.b16 %v646
        %v718 = vunpack.c.l.b16 %v647
        %v719 = vunpack.c.l.b16 %v648
        %v720 = vunpack.c.l.b16 %v649
        %v721 = vunpack.c.l.b16 %v650
        %v722 = vunpack.c.l.b16 %v651
        %v723 = vunpack.c.l.b16 %v652
        %v724 = vunpack.c.l.b16 %v653
        %v725 = vunpack.c.l.b16 %v654
        %v726 = vunpack.c.l.b16 %v655
        %v727 = vunpack.c.l.b16 %v656
        %v728 = vunpack.c.l.b16 %v657
        %v729 = vunpack.c.l.b16 %v658
        %v730 = vunpack.c.l.b16 %v659
        %v731 = vunpack.c.l.b16 %v660
        %v732 = vunpack.c.l.b16 %v661
        %v733 = vunpack.c.l.b16 %v662
        %v734 = vunpack.c.l.b16 %v663
        %v735 = vunpack.c.l.b16 %v664
        %v736 = vpack.c.b16 %v705, %v704
        %v737 = vpack.c.b16 %v707, %v706
        %v738 = vpack.c.b16 %v709, %v708
        %v739 = vpack.c.b16 %v711, %v710
        %v740 = vpack.c.b16 %v713, %v712
        %v741 = vpack.c.b16 %v715, %v714
        %v742 = vpack.c.b16 %v717, %v716
        %v743 = vpack.c.b16 %v719, %v718
        %v744 = vpack.c.b16 %v721, %v720
        %v745 = vpack.c.b16 %v723, %v722
        %v746 = vpack.c.b16 %v725, %v724
        %v747 = vpack.c.b16 %v727, %v726
        %v748 = vpack.c.b16 %v729, %v728
        %v749 = vpack.c.b16 %v731, %v730
        %v750 = vpack.c.b16 %v733, %v732
        %v751 = vpack.c.b16 %v735, %v734
        %768 = vmatprep.subr.bf16.mxu0 0
        %769 = vmatpush1.bf16.msra.mxu0 %v743
        %770 = vmatprep.subr.bf16.mxu0 0
        %771 = vmatpush1.bf16.msra.mxu0 %v742
        %772 = vmatprep.subr.bf16.mxu0 0
        %773 = vmatpush1.bf16.msra.mxu0 %v741
        %774 = vmatprep.subr.bf16.mxu0 0
        %775 = vmatpush1.bf16.msra.mxu0 %v740
        %776 = vmatprep.subr.bf16.mxu0 0
        %777 = vmatpush1.bf16.msra.mxu0 %v739
        %778 = vmatprep.subr.bf16.mxu0 0
        %779 = vmatpush1.bf16.msra.mxu0 %v738
        %780 = vmatprep.subr.bf16.mxu0 0
        %781 = vmatpush1.bf16.msra.mxu0 %v737
        %782 = vmatprep.subr.bf16.mxu0 0
        %783 = vmatpush1.bf16.msra.mxu0 %v736
        %784 = vmatprep.subr.bf16.mxu0 0
        %785 = vmatpush2.bf16.msra.mxu0 %v751
        %786 = vmatprep.subr.bf16.mxu0 0
        %787 = vmatpush2.bf16.msra.mxu0 %v750
        %788 = vmatprep.subr.bf16.mxu0 0
        %789 = vmatpush2.bf16.msra.mxu0 %v749
        %790 = vmatprep.subr.bf16.mxu0 0
        %791 = vmatpush2.bf16.msra.mxu0 %v748
        %792 = vmatprep.subr.bf16.mxu0 0
        %793 = vmatpush2.bf16.msra.mxu0 %v747
        %794 = vmatprep.subr.bf16.mxu0 0
        %795 = vmatpush2.bf16.msra.mxu0 %v746
        %796 = vmatprep.subr.bf16.mxu0 0
        %797 = vmatpush2.bf16.msra.mxu0 %v745
        %798 = vmatprep.subr.bf16.mxu0 0
        %799 = vmatpush2.bf16.msra.mxu0 %v744
        %800 = vmatprep.mubr.bf16.mxu0 %v632
        %801 = vmatmul.mubr.bf16.gmra.mxu0 %v631
        %v802 = vpop.f32.mrf.mxu0
        %v803 = vadd.f32 %v670, %v802
        %v804 = vpop.f32.mrf.mxu0
        %v805 = vpop.f32.mrf.mxu0
        %v806 = vadd.f32 %v670, %v805
        %v807 = vpop.f32.mrf.mxu0
        %808 = vdwg.mxu0
        %v809 = vmul.f32 %v803, 0.5
        %v810 = vmul.f32 %v806, 0.5
        %v811 = vtanh.pop %v809
        %v812 = vtanh.pop %v810
        %v813 = vmul.f32 %v811, 0.5
        %v814 = vmul.f32 %v812, 0.5
        %v815 = vadd.f32 %v813, 0.5
        %v816 = vadd.f32 %v814, 0.5
        %v817 = vpack.c.bf16 %v816, %v815
        %v818 = vld [vmem:[%s7] sm:$0xf]
        %819 = vmatprep.subr.bf16.mxu0 0
        %820 = vmatpush1.bf16.xpose.msra.mxu0 0
        %821 = vmatprep.subr.bf16.mxu0 0
        %822 = vmatpush1.bf16.xpose.msra.mxu0 0
        %823 = vmatprep.subr.bf16.mxu0 0
        %824 = vmatpush1.bf16.xpose.msra.mxu0 0
        %825 = vmatprep.subr.bf16.mxu0 0
        %826 = vmatpush1.bf16.xpose.msra.mxu0 0
        %827 = vmatprep.subr.bf16.mxu0 0
        %828 = vmatpush1.bf16.xpose.msra.mxu0 0
        %829 = vmatprep.subr.bf16.mxu0 0
        %830 = vmatpush1.bf16.xpose.msra.mxu0 0
        %831 = vmatprep.subr.bf16.mxu0 0
        %832 = vmatpush1.bf16.xpose.msra.mxu0 0
        %833 = vmatprep.subr.bf16.mxu0 0
        %834 = vmatpush1.bf16.xpose.msra.mxu0 %v817
        %835 = vmatprep.subr.bf16.mxu0 0
        %836 = vmatpush2.bf16.xpose.msra.mxu0 0
        %837 = vmatprep.subr.bf16.mxu0 0
        %838 = vmatpush2.bf16.xpose.msra.mxu0 0
        %839 = vmatprep.subr.bf16.mxu0 0
        %840 = vmatpush2.bf16.xpose.msra.mxu0 0
        %841 = vmatprep.subr.bf16.mxu0 0
        %842 = vmatpush2.bf16.xpose.msra.mxu0 0
        %843 = vmatprep.subr.bf16.mxu0 0
        %844 = vmatpush2.bf16.xpose.msra.mxu0 0
        %845 = vmatprep.subr.bf16.mxu0 0
        %846 = vmatpush2.bf16.xpose.msra.mxu0 0
        %847 = vmatprep.subr.bf16.mxu0 0
        %848 = vmatpush2.bf16.xpose.msra.mxu0 0
        %849 = vmatprep.subr.bf16.mxu0 0
        %850 = vmatpush2.bf16.xpose.msra.mxu0 0
        %851 = vmatprep.mubr.bf16.mxu0 0
        %852 = vmatmul.mubr.bf16.gmra.mxu0 %v818
        %v853 = vpop.f32.mrf.mxu0
        %v854 = vadd.f32 0.0, %v853
        %v855 = vpop.f32.mrf.mxu0
        %v856 = vpop.f32.mrf.mxu0
        %v857 = vpop.f32.mrf.mxu0
        %858 = vdwg.mxu0
        %v859 = vld [vmem:[#allocation2] sm:$0x1]
        %861 = vset.pattern.permute.xlu0 0
        %862 = vperm.xlu0 %861, %v859
        %v863 = vpop.permute.xlu0 %862
        %v865 = vlaneseq
        %v866 = vshrl.u32 %v865, 7
        %v867 = vsub.s32 0, %v866
        %v868 = vrot.slane %v863, %v867
        %v869 = vadd.f32 %v854, %v868
        %vm870 = vcmask 122880
        %871 = vst.msk [vmem:[%s382] sm:$0x1] %vm870, %v869
        %p872 = scmp.lt.s32.totalorder %s24, 2
        %s873 = scalar_select %p872, %s24, 2
        %s874 = scalar_lea.vmem %s9, %s873
        // Predicated region
        $region65: #{fc_regression_forward.1} parent=55 // pred_check
          %p875 = pneg %p236
        $region66: #{fc_regression_forward.1} parent=55 // pred_check_branch
          %877 = sbr.rel (%p875) target = $region68
        $region67: #{fc_regression_forward.1} parent=55 // pred_region
          _
        $region68: #{fc_regression_forward.1} parent=55 // pred_fallthru
          _
      $region56: #{fc_regression_forward.1} parent=5 // pred_fallthru
        _
      %p878 = scmp.le.s32.totalorder 2, %s19
      // Predicated region
      $region69: #{fc_regression_forward.1} parent=5 // pred_check
        %p879 = pneg %p878
      $region70: #{fc_regression_forward.1} parent=5 // pred_check_branch
        %881 = sbr.rel (%p879) target = $region72
      $region71: #{fc_regression_forward.1} parent=5 // pred_region
        %s882 = ssub.s32 %s19, 2
        // Predicated region
        $region73: #{fc_regression_forward.1} parent=71 // pred_check
          %p883 = pneg %p242
        $region74: #{fc_regression_forward.1} parent=71 // pred_check_branch
          %885 = sbr.rel (%p883) target = $region76
        $region75: #{fc_regression_forward.1} parent=71 // pred_region
          %p886 = scmp.lt.s32.totalorder %s25, 2
          %s887 = scalar_select %p886, %s25, 2
          %s888 = scalar_lea.vmem %s9, %s887
        $region76: #{fc_regression_forward.1} parent=71 // pred_fallthru
          _
      $region72: #{fc_regression_forward.1} parent=5 // pred_fallthru
        _
    $region6: #{fc_regression_forward.1} parent=1 // loop_footer
      %s23 = sadd.s32 1, %s19
    $region7: #{fc_regression_forward.1} parent=1 // loop_footer_branch
      %18 = sbr.rel target = $region3
    $region8: #{fc_regression_forward.1} parent=1 // loop_exit
      _
    %889 = vsyncpa [#allocation4], 1
    %s890 = scalar_lea.sflag [#allocation4], 1
    %891 = vsyncpa %s890, 1
    %892 = vsyncpa [#allocation6], 1

</llo_original>
